<compile_context>
chip_gen: v7x
topology: tpu7x:2x2x1
jax: 0.10.0
libtpu: 0.0.40
codegen_flags: <defaults>
</compile_context>

<pallas_src>
from functools import partial

import jax
import jax.numpy as jnp
from jax.experimental import pallas as pl
from jax.experimental.pallas import tpu as pltpu


def _round_up(x, m):
    return ((x + m - 1) // m) * m


def _pick_time_block(T, B, H, max_tt=32, slab_budget_bytes=8 << 20):
    # drive (in) + hidden_list (out), each double-buffered, f32.
    per_step_bytes = B * H * 4 * 4
    return int(max(1, min(T, max_tt, slab_budget_bytes // per_step_bytes)))


def rnn_recurrence_kernel(drive_ref, h0_ref, w_hh_ref, one_m_a_ref,
                          hid_ref, h_state_ref, *, time_block, tail, seq_len):
    """One grid step = `time_block` recurrent timesteps.

    drive_ref   : (TT, B, H) f32  alpha*(x@w_in + b_in + b_hh) + sigma*sqrt(alpha)*noise
    h0_ref      : (B, H)    f32   initial hidden state
    w_hh_ref    : (H, H)    bf16  recurrent weights with alpha folded into columns
    one_m_a_ref : (1, H)    f32   1 - alpha (broadcasts over batch rows)
    hid_ref     : (TT, B, H) f32  hidden_list output block
    h_state_ref : (B, H)    f32   carried / final hidden (VMEM-resident output block)
    """
    tb = pl.program_id(0)

    # Initialize the carried state from h0 on the first time-block.
    @pl.when(tb == 0)
    def _():
        h_state_ref[...] = h0_ref[...]

    w_hh = w_hh_ref[...]          # (H, H) bf16, VMEM-resident across the whole grid
    one_m_a = one_m_a_ref[...]    # (1, H) f32 — broadcasts along sublanes (no (B,H) temp)

    h = h_state_ref[...]          # (B, H) f32
    # Fully unrolled: only tanh -> MXU dot -> add sit on the sequential critical path;
    # one_m_a*h and drive[tt] are off-path and schedule in parallel.
    for tt in range(time_block):
        act = jnp.tanh(h).astype(jnp.bfloat16)
        h_new = (jnp.dot(act, w_hh, preferred_element_type=jnp.float32)
                 + one_m_a * h + drive_ref[tt])
        if tail and tt >= time_block - tail:
            # Only the last grid block can contain padded (beyond-T) timesteps.
            h_new = jnp.where(tb * time_block + tt < seq_len, h_new, h)
        hid_ref[tt] = h_new       # lane-dense (B, H) store
        h = h_new

    h_state_ref[...] = h


def rnn_forward(x, hidden, noise_tbh, params, sigma_neu=0.05, max_time_block=32):
    """x: (B, T, n_in); hidden: (B, n_hid); noise_tbh: (T, B, n_hid).

    Returns (hidden_list (B,T,n_hid), output_list (B,T,n_out), hidden (B,n_hid)),
    matching the PyTorch module's forward with 'tanh' activation.
    Weights are stored as (in, out) = PyTorch W.T; biases as (1, out).
    """
    B, T, n_in = x.shape
    n_hid = hidden.shape[1]
    w_in, b_in, w_hh, b_hh, w_out, b_out, alpha = params
    n_out = w_out.shape[1]

    # ---- pad WEIGHTS (not activations) to a lane-dense multiple of 128 ----
    H = _round_up(n_hid, 128)
    ph = H - n_hid
    w_in_p = jnp.pad(w_in, ((0, 0), (0, ph)))
    bias_p = jnp.pad(b_in + b_hh, ((0, 0), (0, ph)))
    alpha_p = jnp.pad(alpha, ((0, 0), (0, ph)))              # padded cols -> 0
    one_m_a = 1.0 - alpha_p                                  # padded cols -> 1 (h stays 0)
    nscale_p = sigma_neu * jnp.sqrt(alpha_p)                 # padded cols -> 0
    w_hh_p = jnp.pad(w_hh * alpha, ((0, ph), (0, ph))).astype(jnp.bfloat16)  # alpha folded
    w_out_p = jnp.pad(w_out, ((0, ph), (0, 0)))
    h0_p = jnp.pad(hidden, ((0, 0), (0, ph)))

    # ---- hoisted input projection + fused noise => single "drive" stream ----
    x_t = jnp.transpose(x, (1, 0, 2))                        # (T, B, n_in) — tiny
    proj = (x_t.reshape(T * B, n_in) @ w_in_p + bias_p).reshape(T, B, H)
    noise_p = jnp.pad(noise_tbh, ((0, 0), (0, 0), (0, ph)))  # fuses into the drive fusion
    drive = alpha_p * proj + nscale_p * noise_p              # (T, B, H) f32

    # ---- time blocking (ceil grid, tail guarded in-kernel) ----
    TT = _pick_time_block(T, B, H, max_time_block)
    n_blocks = (T + TT - 1) // TT
    T_pad = n_blocks * TT
    tail = T_pad - T
    if tail:
        drive = jnp.pad(drive, ((0, tail), (0, 0), (0, 0)))

    # ---- explicit VMEM budget (covers v5e 16 MiB scoped default, v7x 64 MiB) ----
    blk_bytes = TT * B * H * 4
    const_bytes = (H * H * 2) * 2 + (B * H * 4) * 3 + (H * 4) * 2
    vmem_needed = 4 * blk_bytes + const_bytes                # drive + hid, double-buffered
    vmem_limit = int(min(max(2 * vmem_needed, 16 * 2**20), 64 * 2**20))

    kernel = partial(rnn_recurrence_kernel, time_block=TT, tail=tail, seq_len=T)

    grid_spec = pltpu.PrefetchScalarGridSpec(
        num_scalar_prefetch=0,
        grid=(n_blocks,),
        in_specs=[
            pl.BlockSpec((TT, B, H), lambda tb: (tb, 0, 0)),   # drive slab (only stream)
            pl.BlockSpec((B, H), lambda tb: (0, 0)),           # h0
            pl.BlockSpec((H, H), lambda tb: (0, 0)),           # w_hh * alpha (bf16, resident)
            pl.BlockSpec((1, H), lambda tb: (0, 0)),           # 1 - alpha
        ],
        out_specs=[
            pl.BlockSpec((TT, B, H), lambda tb: (tb, 0, 0)),   # hidden_list (padded)
            pl.BlockSpec((B, H), lambda tb: (0, 0)),           # carried / final hidden
        ],
    )

    hid_pad, h_final_pad = pl.pallas_call(
        kernel,
        out_shape=(
            jax.ShapeDtypeStruct((T_pad, B, H), jnp.float32),
            jax.ShapeDtypeStruct((B, H), jnp.float32),
        ),
        grid_spec=grid_spec,
        compiler_params=pltpu.CompilerParams(
            dimension_semantics=("arbitrary",),                # sequential recurrence
            vmem_limit_bytes=vmem_limit),
    )(drive, h0_p, w_hh_p, one_m_a)

    # ---- hoisted output projection on the lane-dense padded hidden states ----
    out_tbo = (hid_pad.reshape(T_pad * B, H) @ w_out_p + b_out).reshape(T_pad, B, n_out)

    hidden_list = jnp.transpose(hid_pad[:T, :, :n_hid], (1, 0, 2))   # (B, T, n_hid)
    output_list = jnp.transpose(out_tbo[:T], (1, 0, 2))              # (B, T, n_out)
    h_final = h_final_pad[:, :n_hid]
    return hidden_list, output_list, h_final


def reference_forward(x, hidden, noise_tbh, params, sigma_neu=0.05):
    """Pure-JAX f32 reference mirroring the PyTorch loop (tanh activation)."""
    w_in, b_in, w_hh, b_hh, w_out, b_out, alpha = params
    B, T, _ = x.shape
    x_t = jnp.transpose(x, (1, 0, 2))
    hids, outs = [], []
    h = hidden
    for t in range(T):
        activated = jnp.tanh(h)
        tmp = x_t[t] @ w_in + b_in + activated @ w_hh + b_hh
        noise = noise_tbh[t] * (sigma_neu * jnp.sqrt(alpha))
        h = (1.0 - alpha) * h + alpha * tmp + noise
        hids.append(h)
        outs.append(h @ w_out + b_out)
    return (jnp.transpose(jnp.stack(hids), (1, 0, 2)),
            jnp.transpose(jnp.stack(outs), (1, 0, 2)),
            h)


if __name__ == "__main__":
    # Small shapes consistent with the module.
    B, T = 2, 8
    n_in, n_hid, n_out = 4, 32, 3
    alpha_time_scale = 0.25
    jij_std = 0.045
    sigma_neu = 0.05

    key = jax.random.PRNGKey(0)
    k_x, k_h, k_noise, k1, k2, k3, k4, k5, k6 = jax.random.split(key, 9)

    # Deterministic parameter init (weights stored as (in, out) = PyTorch W.T).
    w_in = jax.random.normal(k1, (n_in, n_hid), jnp.float32) * 0.1
    b_in = jax.random.normal(k2, (1, n_hid), jnp.float32) * 0.1
    w_hh = jax.random.normal(k3, (n_hid, n_hid), jnp.float32) * jij_std
    b_hh = jax.random.normal(k4, (1, n_hid), jnp.float32) * 0.1
    w_out = jax.random.normal(k5, (n_hid, n_out), jnp.float32) * 0.1
    b_out = jax.random.normal(k6, (1, n_out), jnp.float32) * 0.1
    alpha = jnp.ones((1, n_hid), jnp.float32) * alpha_time_scale
    params = (w_in, b_in, w_hh, b_hh, w_out, b_out, alpha)

    x = jax.random.normal(k_x, (B, T, n_in), jnp.float32)
    hidden0 = jax.random.normal(k_h, (B, n_hid), jnp.float32)
    # Pre-sampled standard normals standing in for torch.randn_like at each step.
    noise_tbh = jax.random.normal(k_noise, (T, B, n_hid), jnp.float32)

    hid_list, out_list, h_final = rnn_forward(x, hidden0, noise_tbh, params, sigma_neu)
    jax.block_until_ready((hid_list, out_list, h_final))

    # Correctness check vs. the f32 reference.  Tolerance relaxed vs. 1e-5 because the
    # recurrent matmul runs in bf16 and alpha/noise are pre-folded (fp reordering).
    ref_hid, ref_out, ref_h = reference_forward(x, hidden0, noise_tbh, params, sigma_neu)
    assert jnp.allclose(hid_list, ref_hid, atol=1e-2, rtol=1e-2)
    assert jnp.allclose(out_list, ref_out, atol=1e-2, rtol=1e-2)
    assert jnp.allclose(h_final, ref_h, atol=1e-2, rtol=1e-2)

    print("KERNEL_OK")
</pallas_src>

<mosaic_0001>
module attributes {stable_mosaic.version = 11 : i64} {
  func.func @rnn_recurrence_kernel(%arg0: i32, %arg1: memref<8x2x128xf32, #tpu.memory_space<vmem>>, %arg2: memref<2x128xf32, #tpu.memory_space<vmem>>, %arg3: memref<128x128xbf16, #tpu.memory_space<vmem>>, %arg4: memref<1x128xf32, #tpu.memory_space<vmem>>, %arg5: memref<8x2x128xf32, #tpu.memory_space<vmem>>, %arg6: memref<2x128xf32, #tpu.memory_space<vmem>>) attributes {dimension_semantics = [#tpu.dimension_semantics<arbitrary>], iteration_bounds = array<i64: 1>, scalar_prefetch = 0 : i64, scratch_operands = 0 : i64, tpu.core_type = #tpu.core_type<tc>, window_params = [{transform_indices = @transform_0, window_bounds = array<i64: 8, 2, 128>}, {pipeline_mode = #tpu.pipeline_mode<synchronous>, transform_indices = @transform_1, window_bounds = array<i64: 2, 128>}, {pipeline_mode = #tpu.pipeline_mode<synchronous>, transform_indices = @transform_2, window_bounds = array<i64: 128, 128>}, {pipeline_mode = #tpu.pipeline_mode<synchronous>, transform_indices = @transform_3, window_bounds = array<i64: 1, 128>}, {transform_indices = @transform_4, window_bounds = array<i64: 8, 2, 128>}, {pipeline_mode = #tpu.pipeline_mode<synchronous>, transform_indices = @transform_5, window_bounds = array<i64: 2, 128>}]} {
    %c0_i32 = arith.constant 0 : i32
    %0 = arith.cmpi eq, %arg0, %c0_i32 : i32
    %1 = arith.extui %0 : i1 to i32
    %c0_i32_0 = arith.constant 0 : i32
    %2 = arith.cmpi ne, %1, %c0_i32_0 : i32
    scf.if %2 {
      %c0_56 = arith.constant 0 : index
      %c0_57 = arith.constant 0 : index
      %103 = vector.load %arg2[%c0_56, %c0_57] : memref<2x128xf32, #tpu.memory_space<vmem>>, vector<2x128xf32>
      %c0_58 = arith.constant 0 : index
      %c0_59 = arith.constant 0 : index
      %104 = vector.load %arg6[%c0_58, %c0_59] : memref<2x128xf32, #tpu.memory_space<vmem>>, vector<2x128xf32>
      tpu.vector_store %arg6[%c0_58, %c0_59], %103 {strides = array<i32>} : memref<2x128xf32, #tpu.memory_space<vmem>>, vector<2x128xf32>,
    } else {
    }
    %c0 = arith.constant 0 : index
    %c0_1 = arith.constant 0 : index
    %3 = vector.load %arg3[%c0, %c0_1] : memref<128x128xbf16, #tpu.memory_space<vmem>>, vector<128x128xbf16>
    %c0_2 = arith.constant 0 : index
    %c0_3 = arith.constant 0 : index
    %4 = vector.load %arg4[%c0_2, %c0_3] : memref<1x128xf32, #tpu.memory_space<vmem>>, vector<1x128xf32>
    %c0_4 = arith.constant 0 : index
    %c0_5 = arith.constant 0 : index
    %5 = vector.load %arg6[%c0_4, %c0_5] : memref<2x128xf32, #tpu.memory_space<vmem>>, vector<2x128xf32>
    %6 = math.tanh %5 : vector<2x128xf32>
    %7 = arith.truncf %6 : vector<2x128xf32> to vector<2x128xbf16>
    %cst = arith.constant dense<0.000000e+00> : vector<2x128xf32>
    %8 = tpu.matmul %7, %3, %cst {dimension_numbers = #tpu.dot_dimension_numbers<[1], [0], [0], [1], [0, 0, 1, 1], [], []>} : vector<2x128xbf16>, vector<128x128xbf16>, vector<2x128xf32> -> vector<2x128xf32>
    %9 = vector.broadcast %4 : vector<1x128xf32> to vector<2x128xf32>
    %10 = arith.mulf %9, %5 : vector<2x128xf32>
    %11 = arith.addf %8, %10 : vector<2x128xf32>
    %c0_6 = arith.constant 0 : index
    %c0_7 = arith.constant 0 : index
    %c0_8 = arith.constant 0 : index
    %12 = vector.load %arg1[%c0_6, %c0_7, %c0_8] : memref<8x2x128xf32, #tpu.memory_space<vmem>>, vector<1x2x128xf32>
    %13 = vector.shape_cast %12 : vector<1x2x128xf32> to vector<2x128xf32>
    %14 = arith.addf %11, %13 : vector<2x128xf32>
    %c0_9 = arith.constant 0 : index
    %c0_10 = arith.constant 0 : index
    %c0_11 = arith.constant 0 : index
    %15 = vector.load %arg5[%c0_9, %c0_10, %c0_11] : memref<8x2x128xf32, #tpu.memory_space<vmem>>, vector<1x2x128xf32>
    %16 = vector.shape_cast %15 : vector<1x2x128xf32> to vector<2x128xf32>
    %17 = vector.shape_cast %14 : vector<2x128xf32> to vector<1x2x128xf32>
    tpu.vector_store %arg5[%c0_9, %c0_10, %c0_11], %17 {strides = array<i32>} : memref<8x2x128xf32, #tpu.memory_space<vmem>>, vector<1x2x128xf32>,
    %18 = math.tanh %14 : vector<2x128xf32>
    %19 = arith.truncf %18 : vector<2x128xf32> to vector<2x128xbf16>
    %cst_12 = arith.constant dense<0.000000e+00> : vector<2x128xf32>
    %20 = tpu.matmul %19, %3, %cst_12 {dimension_numbers = #tpu.dot_dimension_numbers<[1], [0], [0], [1], [0, 0, 1, 1], [], []>} : vector<2x128xbf16>, vector<128x128xbf16>, vector<2x128xf32> -> vector<2x128xf32>
    %21 = vector.broadcast %4 : vector<1x128xf32> to vector<2x128xf32>
    %22 = arith.mulf %21, %14 : vector<2x128xf32>
    %23 = arith.addf %20, %22 : vector<2x128xf32>
    %c1 = arith.constant 1 : index
    %c0_13 = arith.constant 0 : index
    %c0_14 = arith.constant 0 : index
    %24 = vector.load %arg1[%c1, %c0_13, %c0_14] : memref<8x2x128xf32, #tpu.memory_space<vmem>>, vector<1x2x128xf32>
    %25 = vector.shape_cast %24 : vector<1x2x128xf32> to vector<2x128xf32>
    %26 = arith.addf %23, %25 : vector<2x128xf32>
    %c1_15 = arith.constant 1 : index
    %c0_16 = arith.constant 0 : index
    %c0_17 = arith.constant 0 : index
    %27 = vector.load %arg5[%c1_15, %c0_16, %c0_17] : memref<8x2x128xf32, #tpu.memory_space<vmem>>, vector<1x2x128xf32>
    %28 = vector.shape_cast %27 : vector<1x2x128xf32> to vector<2x128xf32>
    %29 = vector.shape_cast %26 : vector<2x128xf32> to vector<1x2x128xf32>
    tpu.vector_store %arg5[%c1_15, %c0_16, %c0_17], %29 {strides = array<i32>} : memref<8x2x128xf32, #tpu.memory_space<vmem>>, vector<1x2x128xf32>,
    %30 = math.tanh %26 : vector<2x128xf32>
    %31 = arith.truncf %30 : vector<2x128xf32> to vector<2x128xbf16>
    %cst_18 = arith.constant dense<0.000000e+00> : vector<2x128xf32>
    %32 = tpu.matmul %31, %3, %cst_18 {dimension_numbers = #tpu.dot_dimension_numbers<[1], [0], [0], [1], [0, 0, 1, 1], [], []>} : vector<2x128xbf16>, vector<128x128xbf16>, vector<2x128xf32> -> vector<2x128xf32>
    %33 = vector.broadcast %4 : vector<1x128xf32> to vector<2x128xf32>
    %34 = arith.mulf %33, %26 : vector<2x128xf32>
    %35 = arith.addf %32, %34 : vector<2x128xf32>
    %c2 = arith.constant 2 : index
    %c0_19 = arith.constant 0 : index
    %c0_20 = arith.constant 0 : index
    %36 = vector.load %arg1[%c2, %c0_19, %c0_20] : memref<8x2x128xf32, #tpu.memory_space<vmem>>, vector<1x2x128xf32>
    %37 = vector.shape_cast %36 : vector<1x2x128xf32> to vector<2x128xf32>
    %38 = arith.addf %35, %37 : vector<2x128xf32>
    %c2_21 = arith.constant 2 : index
    %c0_22 = arith.constant 0 : index
    %c0_23 = arith.constant 0 : index
    %39 = vector.load %arg5[%c2_21, %c0_22, %c0_23] : memref<8x2x128xf32, #tpu.memory_space<vmem>>, vector<1x2x128xf32>
    %40 = vector.shape_cast %39 : vector<1x2x128xf32> to vector<2x128xf32>
    %41 = vector.shape_cast %38 : vector<2x128xf32> to vector<1x2x128xf32>
    tpu.vector_store %arg5[%c2_21, %c0_22, %c0_23], %41 {strides = array<i32>} : memref<8x2x128xf32, #tpu.memory_space<vmem>>, vector<1x2x128xf32>,
    %42 = math.tanh %38 : vector<2x128xf32>
    %43 = arith.truncf %42 : vector<2x128xf32> to vector<2x128xbf16>
    %cst_24 = arith.constant dense<0.000000e+00> : vector<2x128xf32>
    %44 = tpu.matmul %43, %3, %cst_24 {dimension_numbers = #tpu.dot_dimension_numbers<[1], [0], [0], [1], [0, 0, 1, 1], [], []>} : vector<2x128xbf16>, vector<128x128xbf16>, vector<2x128xf32> -> vector<2x128xf32>
    %45 = vector.broadcast %4 : vector<1x128xf32> to vector<2x128xf32>
    %46 = arith.mulf %45, %38 : vector<2x128xf32>
    %47 = arith.addf %44, %46 : vector<2x128xf32>
    %c3 = arith.constant 3 : index
    %c0_25 = arith.constant 0 : index
    %c0_26 = arith.constant 0 : index
    %48 = vector.load %arg1[%c3, %c0_25, %c0_26] : memref<8x2x128xf32, #tpu.memory_space<vmem>>, vector<1x2x128xf32>
    %49 = vector.shape_cast %48 : vector<1x2x128xf32> to vector<2x128xf32>
    %50 = arith.addf %47, %49 : vector<2x128xf32>
    %c3_27 = arith.constant 3 : index
    %c0_28 = arith.constant 0 : index
    %c0_29 = arith.constant 0 : index
    %51 = vector.load %arg5[%c3_27, %c0_28, %c0_29] : memref<8x2x128xf32, #tpu.memory_space<vmem>>, vector<1x2x128xf32>
    %52 = vector.shape_cast %51 : vector<1x2x128xf32> to vector<2x128xf32>
    %53 = vector.shape_cast %50 : vector<2x128xf32> to vector<1x2x128xf32>
    tpu.vector_store %arg5[%c3_27, %c0_28, %c0_29], %53 {strides = array<i32>} : memref<8x2x128xf32, #tpu.memory_space<vmem>>, vector<1x2x128xf32>,
    %54 = math.tanh %50 : vector<2x128xf32>
    %55 = arith.truncf %54 : vector<2x128xf32> to vector<2x128xbf16>
    %cst_30 = arith.constant dense<0.000000e+00> : vector<2x128xf32>
    %56 = tpu.matmul %55, %3, %cst_30 {dimension_numbers = #tpu.dot_dimension_numbers<[1], [0], [0], [1], [0, 0, 1, 1], [], []>} : vector<2x128xbf16>, vector<128x128xbf16>, vector<2x128xf32> -> vector<2x128xf32>
    %57 = vector.broadcast %4 : vector<1x128xf32> to vector<2x128xf32>
    %58 = arith.mulf %57, %50 : vector<2x128xf32>
    %59 = arith.addf %56, %58 : vector<2x128xf32>
    %c4 = arith.constant 4 : index
    %c0_31 = arith.constant 0 : index
    %c0_32 = arith.constant 0 : index
    %60 = vector.load %arg1[%c4, %c0_31, %c0_32] : memref<8x2x128xf32, #tpu.memory_space<vmem>>, vector<1x2x128xf32>
    %61 = vector.shape_cast %60 : vector<1x2x128xf32> to vector<2x128xf32>
    %62 = arith.addf %59, %61 : vector<2x128xf32>
    %c4_33 = arith.constant 4 : index
    %c0_34 = arith.constant 0 : index
    %c0_35 = arith.constant 0 : index
    %63 = vector.load %arg5[%c4_33, %c0_34, %c0_35] : memref<8x2x128xf32, #tpu.memory_space<vmem>>, vector<1x2x128xf32>
    %64 = vector.shape_cast %63 : vector<1x2x128xf32> to vector<2x128xf32>
    %65 = vector.shape_cast %62 : vector<2x128xf32> to vector<1x2x128xf32>
    tpu.vector_store %arg5[%c4_33, %c0_34, %c0_35], %65 {strides = array<i32>} : memref<8x2x128xf32, #tpu.memory_space<vmem>>, vector<1x2x128xf32>,
    %66 = math.tanh %62 : vector<2x128xf32>
    %67 = arith.truncf %66 : vector<2x128xf32> to vector<2x128xbf16>
    %cst_36 = arith.constant dense<0.000000e+00> : vector<2x128xf32>
    %68 = tpu.matmul %67, %3, %cst_36 {dimension_numbers = #tpu.dot_dimension_numbers<[1], [0], [0], [1], [0, 0, 1, 1], [], []>} : vector<2x128xbf16>, vector<128x128xbf16>, vector<2x128xf32> -> vector<2x128xf32>
    %69 = vector.broadcast %4 : vector<1x128xf32> to vector<2x128xf32>
    %70 = arith.mulf %69, %62 : vector<2x128xf32>
    %71 = arith.addf %68, %70 : vector<2x128xf32>
    %c5 = arith.constant 5 : index
    %c0_37 = arith.constant 0 : index
    %c0_38 = arith.constant 0 : index
    %72 = vector.load %arg1[%c5, %c0_37, %c0_38] : memref<8x2x128xf32, #tpu.memory_space<vmem>>, vector<1x2x128xf32>
    %73 = vector.shape_cast %72 : vector<1x2x128xf32> to vector<2x128xf32>
    %74 = arith.addf %71, %73 : vector<2x128xf32>
    %c5_39 = arith.constant 5 : index
    %c0_40 = arith.constant 0 : index
    %c0_41 = arith.constant 0 : index
    %75 = vector.load %arg5[%c5_39, %c0_40, %c0_41] : memref<8x2x128xf32, #tpu.memory_space<vmem>>, vector<1x2x128xf32>
    %76 = vector.shape_cast %75 : vector<1x2x128xf32> to vector<2x128xf32>
    %77 = vector.shape_cast %74 : vector<2x128xf32> to vector<1x2x128xf32>
    tpu.vector_store %arg5[%c5_39, %c0_40, %c0_41], %77 {strides = array<i32>} : memref<8x2x128xf32, #tpu.memory_space<vmem>>, vector<1x2x128xf32>,
    %78 = math.tanh %74 : vector<2x128xf32>
    %79 = arith.truncf %78 : vector<2x128xf32> to vector<2x128xbf16>
    %cst_42 = arith.constant dense<0.000000e+00> : vector<2x128xf32>
    %80 = tpu.matmul %79, %3, %cst_42 {dimension_numbers = #tpu.dot_dimension_numbers<[1], [0], [0], [1], [0, 0, 1, 1], [], []>} : vector<2x128xbf16>, vector<128x128xbf16>, vector<2x128xf32> -> vector<2x128xf32>
    %81 = vector.broadcast %4 : vector<1x128xf32> to vector<2x128xf32>
    %82 = arith.mulf %81, %74 : vector<2x128xf32>
    %83 = arith.addf %80, %82 : vector<2x128xf32>
    %c6 = arith.constant 6 : index
    %c0_43 = arith.constant 0 : index
    %c0_44 = arith.constant 0 : index
    %84 = vector.load %arg1[%c6, %c0_43, %c0_44] : memref<8x2x128xf32, #tpu.memory_space<vmem>>, vector<1x2x128xf32>
    %85 = vector.shape_cast %84 : vector<1x2x128xf32> to vector<2x128xf32>
    %86 = arith.addf %83, %85 : vector<2x128xf32>
    %c6_45 = arith.constant 6 : index
    %c0_46 = arith.constant 0 : index
    %c0_47 = arith.constant 0 : index
    %87 = vector.load %arg5[%c6_45, %c0_46, %c0_47] : memref<8x2x128xf32, #tpu.memory_space<vmem>>, vector<1x2x128xf32>
    %88 = vector.shape_cast %87 : vector<1x2x128xf32> to vector<2x128xf32>
    %89 = vector.shape_cast %86 : vector<2x128xf32> to vector<1x2x128xf32>
    tpu.vector_store %arg5[%c6_45, %c0_46, %c0_47], %89 {strides = array<i32>} : memref<8x2x128xf32, #tpu.memory_space<vmem>>, vector<1x2x128xf32>,
    %90 = math.tanh %86 : vector<2x128xf32>
    %91 = arith.truncf %90 : vector<2x128xf32> to vector<2x128xbf16>
    %cst_48 = arith.constant dense<0.000000e+00> : vector<2x128xf32>
    %92 = tpu.matmul %91, %3, %cst_48 {dimension_numbers = #tpu.dot_dimension_numbers<[1], [0], [0], [1], [0, 0, 1, 1], [], []>} : vector<2x128xbf16>, vector<128x128xbf16>, vector<2x128xf32> -> vector<2x128xf32>
    %93 = vector.broadcast %4 : vector<1x128xf32> to vector<2x128xf32>
    %94 = arith.mulf %93, %86 : vector<2x128xf32>
    %95 = arith.addf %92, %94 : vector<2x128xf32>
    %c7 = arith.constant 7 : index
    %c0_49 = arith.constant 0 : index
    %c0_50 = arith.constant 0 : index
    %96 = vector.load %arg1[%c7, %c0_49, %c0_50] : memref<8x2x128xf32, #tpu.memory_space<vmem>>, vector<1x2x128xf32>
    %97 = vector.shape_cast %96 : vector<1x2x128xf32> to vector<2x128xf32>
    %98 = arith.addf %95, %97 : vector<2x128xf32>
    %c7_51 = arith.constant 7 : index
    %c0_52 = arith.constant 0 : index
    %c0_53 = arith.constant 0 : index
    %99 = vector.load %arg5[%c7_51, %c0_52, %c0_53] : memref<8x2x128xf32, #tpu.memory_space<vmem>>, vector<1x2x128xf32>
    %100 = vector.shape_cast %99 : vector<1x2x128xf32> to vector<2x128xf32>
    %101 = vector.shape_cast %98 : vector<2x128xf32> to vector<1x2x128xf32>
    tpu.vector_store %arg5[%c7_51, %c0_52, %c0_53], %101 {strides = array<i32>} : memref<8x2x128xf32, #tpu.memory_space<vmem>>, vector<1x2x128xf32>,
    %c0_54 = arith.constant 0 : index
    %c0_55 = arith.constant 0 : index
    %102 = vector.load %arg6[%c0_54, %c0_55] : memref<2x128xf32, #tpu.memory_space<vmem>>, vector<2x128xf32>
    tpu.vector_store %arg6[%c0_54, %c0_55], %98 {strides = array<i32>} : memref<2x128xf32, #tpu.memory_space<vmem>>, vector<2x128xf32>,
    return
  }
  func.func @transform_0(%arg0: i32) -> (i32, i32, i32) {
    %c0_i32 = arith.constant 0 : i32
    %c0_i32_0 = arith.constant 0 : i32
    %c0_i32_1 = arith.constant 0 : i32
    return %arg0, %c0_i32, %c0_i32_0 : i32, i32, i32
  }
  func.func @transform_1(%arg0: i32) -> (i32, i32) {
    %c0_i32 = arith.constant 0 : i32
    %c0_i32_0 = arith.constant 0 : i32
    %c0_i32_1 = arith.constant 0 : i32
    return %c0_i32, %c0_i32_0 : i32, i32
  }
  func.func @transform_2(%arg0: i32) -> (i32, i32) {
    %c0_i32 = arith.constant 0 : i32
    %c0_i32_0 = arith.constant 0 : i32
    %c0_i32_1 = arith.constant 0 : i32
    return %c0_i32, %c0_i32_0 : i32, i32
  }
  func.func @transform_3(%arg0: i32) -> (i32, i32) {
    %c0_i32 = arith.constant 0 : i32
    %c0_i32_0 = arith.constant 0 : i32
    %c0_i32_1 = arith.constant 0 : i32
    return %c0_i32, %c0_i32_0 : i32, i32
  }
  func.func @transform_4(%arg0: i32) -> (i32, i32, i32) {
    %c0_i32 = arith.constant 0 : i32
    %c0_i32_0 = arith.constant 0 : i32
    %c0_i32_1 = arith.constant 0 : i32
    return %arg0, %c0_i32, %c0_i32_0 : i32, i32, i32
  }
  func.func @transform_5(%arg0: i32) -> (i32, i32) {
    %c0_i32 = arith.constant 0 : i32
    %c0_i32_0 = arith.constant 0 : i32
    %c0_i32_1 = arith.constant 0 : i32
    return %c0_i32, %c0_i32_0 : i32, i32
  }
}

</mosaic_0001>

<llo_original>
// kernel: tpu_custom_call.1
$region0: #{tpu_custom_call.1}
  #allocation0 [shape = 'u32[]', space=smem, size = 0x4, offset = 0x4, fixed_abs, tag = 'smem constant byte address 0x4 - core index']
  #allocation1 [shape = 'u32[144,128]{1,0:T(1,128)}', space=vmem, size = 0x12000, scoped, tag = 'internal scratch']
  %s0 = inlined_call_operand.hbm [shape: f32[8,2,128], index: 0, kind: input, shape index: {}]
  %s1 = inlined_call_operand.vmem [shape: f32[2,128], index: 1, kind: input, shape index: {}]
  %s2 = inlined_call_operand.hbm [shape: bf16[128,128], index: 2, kind: input, shape index: {}]
  %s3 = inlined_call_operand.vmem [shape: f32[1,128], index: 3, kind: input, shape index: {}]
  %s4 = inlined_call_operand.hbm [shape: f32[8,2,128], index: 4, kind: output, shape index: {0}]
  %s5 = inlined_call_operand.hbm [shape: f32[2,128], index: 5, kind: output, shape index: {1}]
  %6 = xla_tuple %s4, %s5
  %s7 = sld [smem:[#allocation0]]
  $region46: #{tpu_custom_call.1} parent=0
    _
  %s9 = ssub.s32 1, %s7
  %s10 = scalar_select 0, %s9, %s7
  $region1: #{tpu_custom_call.1} parent=0
    #allocation2 [shape = 'u8[8192]{0}', space=vmem, size = 0x2000, scoped, tag = 'input window, operand 0, single buffered']
    #allocation3 [shape = 's32[1]{0}', space=sflag, size = 0x4, scoped, tag = 'scoped memory for tpu_custom_call.1']
    #allocation4 [shape = 's32[1]{0}', space=sflag, size = 0x4, scoped, tag = 'scoped memory for tpu_custom_call.1']
    #allocation5 [shape = 'u8[32768]{0}', space=vmem, size = 0x8000, scoped, tag = 'input window, operand 2, single buffered']
    #allocation6 [shape = 's32[1]{0}', space=sflag, size = 0x4, scoped, tag = 'scoped memory for tpu_custom_call.1']
    #allocation7 [shape = 'u8[8192]{0}', space=vmem, size = 0x2000, scoped, tag = 'output window, operand 0, single buffered']
    #allocation8 [shape = 'u8[1024]{0}', space=vmem, size = 0x400, scoped, tag = 'output window, operand 1, single buffered']
    #allocation9 [shape = 's32[1]{0}', space=sflag, size = 0x4, scoped, tag = 'scoped memory for tpu_custom_call.1']
    %11 = vsyncpa [#allocation3], 0
    %12 = vsyncpa [#allocation6], 0
    %13 = vsyncpa [#allocation4], 0
    %14 = vsyncpa [#allocation9], 0
    // Predicated region
    $region2: #{tpu_custom_call.1} parent=1 // pred_check
      _
    $region3: #{tpu_custom_call.1} parent=1 // pred_check_branch
      %16 = sbr.rel (0) target = $region5
    $region4: #{tpu_custom_call.1} parent=1 // pred_region
      %s18 = ssub.s32 256, 256
      %19 = vsyncadd [#allocation3], %s18
      %s20 = sshll.u32 [#allocation2], 4
      %s21 = int_to_ptr.vmem [resolvable:$true] %s20
      %26 = dma.hbm_to_vmem [thread:$0]  %s0, 256, %s21, [#allocation3], 32, 32, 2
    $region5: #{tpu_custom_call.1} parent=1 // pred_fallthru
      _
    // Predicated region
    $region6: #{tpu_custom_call.1} parent=1 // pred_check
      _
    $region7: #{tpu_custom_call.1} parent=1 // pred_check_branch
      %28 = sbr.rel (0) target = $region9
    $region8: #{tpu_custom_call.1} parent=1 // pred_region
      _
    $region9: #{tpu_custom_call.1} parent=1 // pred_fallthru
      _
    // Predicated region
    $region10: #{tpu_custom_call.1} parent=1 // pred_check
      _
    $region11: #{tpu_custom_call.1} parent=1 // pred_check_branch
      %30 = sbr.rel (0) target = $region13
    $region12: #{tpu_custom_call.1} parent=1 // pred_region
      %s32 = ssub.s32 1024, 1024
      %33 = vsyncadd [#allocation6], %s32
      %s34 = sshll.u32 [#allocation5], 4
      %s35 = int_to_ptr.vmem [resolvable:$true] %s34
      %40 = dma.hbm_to_vmem [thread:$0]  %s2, 1024, %s35, [#allocation6], 64, 64, 4
    $region13: #{tpu_custom_call.1} parent=1 // pred_fallthru
      _
    // Predicated region
    $region14: #{tpu_custom_call.1} parent=1 // pred_check
      _
    $region15: #{tpu_custom_call.1} parent=1 // pred_check_branch
      %42 = sbr.rel (0) target = $region17
    $region16: #{tpu_custom_call.1} parent=1 // pred_region
      _
    $region17: #{tpu_custom_call.1} parent=1 // pred_fallthru
      _
    // Predicated region
    $region18: #{tpu_custom_call.1} parent=1 // pred_check
      _
    $region19: #{tpu_custom_call.1} parent=1 // pred_check_branch
      %44 = sbr.rel (0) target = $region21
    $region20: #{tpu_custom_call.1} parent=1 // pred_region
      %45 = dma.done [#allocation3], 256
    $region21: #{tpu_custom_call.1} parent=1 // pred_fallthru
      _
    // Predicated region
    $region22: #{tpu_custom_call.1} parent=1 // pred_check
      _
    $region23: #{tpu_custom_call.1} parent=1 // pred_check_branch
      %47 = sbr.rel (0) target = $region25
    $region24: #{tpu_custom_call.1} parent=1 // pred_region
      %48 = dma.done [#allocation6], 1024
    $region25: #{tpu_custom_call.1} parent=1 // pred_fallthru
      _
    %p50 = scmp.eq.s32.totalorder 0, 0
    // Predicated region
    $region26: #{tpu_custom_call.1} parent=1 // pred_check
      %p51 = pneg %p50
    $region27: #{tpu_custom_call.1} parent=1 // pred_check_branch
      %53 = sbr.rel (%p51) target = $region29
    $region28: #{tpu_custom_call.1} parent=1 // pred_region
      %v54 = vld [vmem:[%s1] sm:$0x3]
      %55 = vst [vmem:[#allocation8] sm:$0x3] %v54
    $region29: #{tpu_custom_call.1} parent=1 // pred_fallthru
      _
    %v56 = vld [vmem:[#allocation5] sm:$0xf]
    %v57 = vld [vmem:[#allocation5 + $0x4] sm:$0xf]
    %v58 = vld [vmem:[#allocation5 + $0x8] sm:$0xf]
    %v59 = vld [vmem:[#allocation5 + $0xc] sm:$0xf]
    %v60 = vld [vmem:[#allocation5 + $0x10] sm:$0xf]
    %v61 = vld [vmem:[#allocation5 + $0x14] sm:$0xf]
    %v62 = vld [vmem:[#allocation5 + $0x18] sm:$0xf]
    %v63 = vld [vmem:[#allocation5 + $0x1c] sm:$0xf]
    %v64 = vld [vmem:[#allocation5 + $0x20] sm:$0xf]
    %v65 = vld [vmem:[#allocation5 + $0x24] sm:$0xf]
    %v66 = vld [vmem:[#allocation5 + $0x28] sm:$0xf]
    %v67 = vld [vmem:[#allocation5 + $0x2c] sm:$0xf]
    %v68 = vld [vmem:[#allocation5 + $0x30] sm:$0xf]
    %v69 = vld [vmem:[#allocation5 + $0x34] sm:$0xf]
    %v70 = vld [vmem:[#allocation5 + $0x38] sm:$0xf]
    %v71 = vld [vmem:[#allocation5 + $0x3c] sm:$0xf]
    %v72 = vld [vmem:[%s3] sm:$0x1]
    %v73 = vld [vmem:[#allocation8] sm:$0x3]
    %v74 = vtanh.pop %v73
    %v75 = vpack.c.bf16 %v74, %v74
    %v77 = vlaneseq
    %v78 = vshrl.u32 %v77, 7
    %v79 = vsub.s32 0, %v78
    %v80 = vrot.slane %v72, %v79
    %v82 = vmul.f32 %v80, %v73
    %v99 = vunpack.c.l.b16 %v56
    %v100 = vunpack.c.l.b16 %v57
    %v101 = vunpack.c.l.b16 %v58
    %v102 = vunpack.c.l.b16 %v59
    %v103 = vunpack.c.l.b16 %v60
    %v104 = vunpack.c.l.b16 %v61
    %v105 = vunpack.c.l.b16 %v62
    %v106 = vunpack.c.l.b16 %v63
    %v107 = vunpack.c.l.b16 %v64
    %v108 = vunpack.c.l.b16 %v65
    %v109 = vunpack.c.l.b16 %v66
    %v110 = vunpack.c.l.b16 %v67
    %v111 = vunpack.c.l.b16 %v68
    %v112 = vunpack.c.l.b16 %v69
    %v113 = vunpack.c.l.b16 %v70
    %v114 = vunpack.c.l.b16 %v71
    %v115 = vpack.c.b16 %v100, %v99
    %v116 = vpack.c.b16 %v102, %v101
    %v117 = vpack.c.b16 %v104, %v103
    %v118 = vpack.c.b16 %v106, %v105
    %v119 = vpack.c.b16 %v108, %v107
    %v120 = vpack.c.b16 %v110, %v109
    %v121 = vpack.c.b16 %v112, %v111
    %v122 = vpack.c.b16 %v114, %v113
    %131 = vmatprep.subr.bf16.mxu0 0
    %132 = vmatpush1.bf16.msra.mxu0 %v115
    %133 = vmatprep.subr.bf16.mxu0 0
    %134 = vmatpush1.bf16.msra.mxu0 %v116
    %135 = vmatprep.subr.bf16.mxu0 0
    %136 = vmatpush1.bf16.msra.mxu0 %v117
    %137 = vmatprep.subr.bf16.mxu0 0
    %138 = vmatpush1.bf16.msra.mxu0 %v118
    %139 = vmatprep.subr.bf16.mxu0 0
    %140 = vmatpush1.bf16.msra.mxu0 %v119
    %141 = vmatprep.subr.bf16.mxu0 0
    %142 = vmatpush1.bf16.msra.mxu0 %v120
    %143 = vmatprep.subr.bf16.mxu0 0
    %144 = vmatpush1.bf16.msra.mxu0 %v121
    %145 = vmatprep.subr.bf16.mxu0 0
    %146 = vmatpush1.bf16.msra.mxu0 %v122
    %147 = vmatprep.subr.bf16.mxu0 0
    %148 = vmatpush1.bf16.msra.mxu0 0
    %149 = vmatprep.subr.bf16.mxu0 0
    %150 = vmatpush1.bf16.msra.mxu0 0
    %151 = vmatprep.subr.bf16.mxu0 0
    %152 = vmatpush1.bf16.msra.mxu0 0
    %153 = vmatprep.subr.bf16.mxu0 0
    %154 = vmatpush1.bf16.msra.mxu0 0
    %155 = vmatprep.subr.bf16.mxu0 0
    %156 = vmatpush1.bf16.msra.mxu0 0
    %157 = vmatprep.subr.bf16.mxu0 0
    %158 = vmatpush1.bf16.msra.mxu0 0
    %159 = vmatprep.subr.bf16.mxu0 0
    %160 = vmatpush1.bf16.msra.mxu0 0
    %161 = vmatprep.subr.bf16.mxu0 0
    %162 = vmatpush1.bf16.msra.mxu0 0
    %163 = vmatprep.mubr.bf16.mxu0 0
    %164 = vmatmul.mubr.bf16.gmra.mrb[0].mxu0 %v75
    %v165 = vpop.f32.mrb[0].mxu0
    %v166 = vadd.f32 %v82, %v165
    %v167 = vpop.f32.mrb[0].mxu0
    %v168 = vpop.f32.mrb[0].mxu0
    %v169 = vpop.f32.mrb[0].mxu0
    %170 = vdwg.mxu0
    %v171 = vld [vmem:[#allocation2] sm:$0x3]
    %v172 = vadd.f32 %v166, %v171
    %173 = vst [vmem:[#allocation7] sm:$0x3] %v172
    %v174 = vtanh.pop %v172
    %v175 = vpack.c.bf16 %v174, %v174
    %v176 = vmul.f32 %v80, %v172
    %177 = vmatprep.subr.bf16.mxu0 0
    %178 = vmatpush1.bf16.msra.mxu0 %v115
    %179 = vmatprep.subr.bf16.mxu0 0
    %180 = vmatpush1.bf16.msra.mxu0 %v116
    %181 = vmatprep.subr.bf16.mxu0 0
    %182 = vmatpush1.bf16.msra.mxu0 %v117
    %183 = vmatprep.subr.bf16.mxu0 0
    %184 = vmatpush1.bf16.msra.mxu0 %v118
    %185 = vmatprep.subr.bf16.mxu0 0
    %186 = vmatpush1.bf16.msra.mxu0 %v119
    %187 = vmatprep.subr.bf16.mxu0 0
    %188 = vmatpush1.bf16.msra.mxu0 %v120
    %189 = vmatprep.subr.bf16.mxu0 0
    %190 = vmatpush1.bf16.msra.mxu0 %v121
    %191 = vmatprep.subr.bf16.mxu0 0
    %192 = vmatpush1.bf16.msra.mxu0 %v122
    %193 = vmatprep.subr.bf16.mxu0 0
    %194 = vmatpush1.bf16.msra.mxu0 0
    %195 = vmatprep.subr.bf16.mxu0 0
    %196 = vmatpush1.bf16.msra.mxu0 0
    %197 = vmatprep.subr.bf16.mxu0 0
    %198 = vmatpush1.bf16.msra.mxu0 0
    %199 = vmatprep.subr.bf16.mxu0 0
    %200 = vmatpush1.bf16.msra.mxu0 0
    %201 = vmatprep.subr.bf16.mxu0 0
    %202 = vmatpush1.bf16.msra.mxu0 0
    %203 = vmatprep.subr.bf16.mxu0 0
    %204 = vmatpush1.bf16.msra.mxu0 0
    %205 = vmatprep.subr.bf16.mxu0 0
    %206 = vmatpush1.bf16.msra.mxu0 0
    %207 = vmatprep.subr.bf16.mxu0 0
    %208 = vmatpush1.bf16.msra.mxu0 0
    %209 = vmatprep.mubr.bf16.mxu0 0
    %210 = vmatmul.mubr.bf16.gmra.mrb[0].mxu0 %v175
    %v211 = vpop.f32.mrb[0].mxu0
    %v212 = vadd.f32 %v176, %v211
    %v213 = vpop.f32.mrb[0].mxu0
    %v214 = vpop.f32.mrb[0].mxu0
    %v215 = vpop.f32.mrb[0].mxu0
    %216 = vdwg.mxu0
    %s217 = scalar_lea.vmem [#allocation2], 2
    %v218 = vld [vmem:[%s217] sm:$0x3]
    %v219 = vadd.f32 %v212, %v218
    %s220 = scalar_lea.vmem [#allocation7], 2
    %221 = vst [vmem:[%s220] sm:$0x3] %v219
    %v222 = vtanh.pop %v219
    %v223 = vpack.c.bf16 %v222, %v222
    %v224 = vmul.f32 %v80, %v219
    %225 = vmatprep.subr.bf16.mxu0 0
    %226 = vmatpush1.bf16.msra.mxu0 %v115
    %227 = vmatprep.subr.bf16.mxu0 0
    %228 = vmatpush1.bf16.msra.mxu0 %v116
    %229 = vmatprep.subr.bf16.mxu0 0
    %230 = vmatpush1.bf16.msra.mxu0 %v117
    %231 = vmatprep.subr.bf16.mxu0 0
    %232 = vmatpush1.bf16.msra.mxu0 %v118
    %233 = vmatprep.subr.bf16.mxu0 0
    %234 = vmatpush1.bf16.msra.mxu0 %v119
    %235 = vmatprep.subr.bf16.mxu0 0
    %236 = vmatpush1.bf16.msra.mxu0 %v120
    %237 = vmatprep.subr.bf16.mxu0 0
    %238 = vmatpush1.bf16.msra.mxu0 %v121
    %239 = vmatprep.subr.bf16.mxu0 0
    %240 = vmatpush1.bf16.msra.mxu0 %v122
    %241 = vmatprep.subr.bf16.mxu0 0
    %242 = vmatpush1.bf16.msra.mxu0 0
    %243 = vmatprep.subr.bf16.mxu0 0
    %244 = vmatpush1.bf16.msra.mxu0 0
    %245 = vmatprep.subr.bf16.mxu0 0
    %246 = vmatpush1.bf16.msra.mxu0 0
    %247 = vmatprep.subr.bf16.mxu0 0
    %248 = vmatpush1.bf16.msra.mxu0 0
    %249 = vmatprep.subr.bf16.mxu0 0
    %250 = vmatpush1.bf16.msra.mxu0 0
    %251 = vmatprep.subr.bf16.mxu0 0
    %252 = vmatpush1.bf16.msra.mxu0 0
    %253 = vmatprep.subr.bf16.mxu0 0
    %254 = vmatpush1.bf16.msra.mxu0 0
    %255 = vmatprep.subr.bf16.mxu0 0
    %256 = vmatpush1.bf16.msra.mxu0 0
    %257 = vmatprep.mubr.bf16.mxu0 0
    %258 = vmatmul.mubr.bf16.gmra.mrb[0].mxu0 %v223
    %v259 = vpop.f32.mrb[0].mxu0
    %v260 = vadd.f32 %v224, %v259
    %v261 = vpop.f32.mrb[0].mxu0
    %v262 = vpop.f32.mrb[0].mxu0
    %v263 = vpop.f32.mrb[0].mxu0
    %264 = vdwg.mxu0
    %s265 = scalar_lea.vmem [#allocation2], 4
    %v266 = vld [vmem:[%s265] sm:$0x3]
    %v267 = vadd.f32 %v260, %v266
    %s268 = scalar_lea.vmem [#allocation7], 4
    %269 = vst [vmem:[%s268] sm:$0x3] %v267
    %v270 = vtanh.pop %v267
    %v271 = vpack.c.bf16 %v270, %v270
    %v272 = vmul.f32 %v80, %v267
    %273 = vmatprep.subr.bf16.mxu0 0
    %274 = vmatpush1.bf16.msra.mxu0 %v115
    %275 = vmatprep.subr.bf16.mxu0 0
    %276 = vmatpush1.bf16.msra.mxu0 %v116
    %277 = vmatprep.subr.bf16.mxu0 0
    %278 = vmatpush1.bf16.msra.mxu0 %v117
    %279 = vmatprep.subr.bf16.mxu0 0
    %280 = vmatpush1.bf16.msra.mxu0 %v118
    %281 = vmatprep.subr.bf16.mxu0 0
    %282 = vmatpush1.bf16.msra.mxu0 %v119
    %283 = vmatprep.subr.bf16.mxu0 0
    %284 = vmatpush1.bf16.msra.mxu0 %v120
    %285 = vmatprep.subr.bf16.mxu0 0
    %286 = vmatpush1.bf16.msra.mxu0 %v121
    %287 = vmatprep.subr.bf16.mxu0 0
    %288 = vmatpush1.bf16.msra.mxu0 %v122
    %289 = vmatprep.subr.bf16.mxu0 0
    %290 = vmatpush1.bf16.msra.mxu0 0
    %291 = vmatprep.subr.bf16.mxu0 0
    %292 = vmatpush1.bf16.msra.mxu0 0
    %293 = vmatprep.subr.bf16.mxu0 0
    %294 = vmatpush1.bf16.msra.mxu0 0
    %295 = vmatprep.subr.bf16.mxu0 0
    %296 = vmatpush1.bf16.msra.mxu0 0
    %297 = vmatprep.subr.bf16.mxu0 0
    %298 = vmatpush1.bf16.msra.mxu0 0
    %299 = vmatprep.subr.bf16.mxu0 0
    %300 = vmatpush1.bf16.msra.mxu0 0
    %301 = vmatprep.subr.bf16.mxu0 0
    %302 = vmatpush1.bf16.msra.mxu0 0
    %303 = vmatprep.subr.bf16.mxu0 0
    %304 = vmatpush1.bf16.msra.mxu0 0
    %305 = vmatprep.mubr.bf16.mxu0 0
    %306 = vmatmul.mubr.bf16.gmra.mrb[0].mxu0 %v271
    %v307 = vpop.f32.mrb[0].mxu0
    %v308 = vadd.f32 %v272, %v307
    %v309 = vpop.f32.mrb[0].mxu0
    %v310 = vpop.f32.mrb[0].mxu0
    %v311 = vpop.f32.mrb[0].mxu0
    %312 = vdwg.mxu0
    %s313 = scalar_lea.vmem [#allocation2], 6
    %v314 = vld [vmem:[%s313] sm:$0x3]
    %v315 = vadd.f32 %v308, %v314
    %s316 = scalar_lea.vmem [#allocation7], 6
    %317 = vst [vmem:[%s316] sm:$0x3] %v315
    %v318 = vtanh.pop %v315
    %v319 = vpack.c.bf16 %v318, %v318
    %v320 = vmul.f32 %v80, %v315
    %321 = vmatprep.subr.bf16.mxu0 0
    %322 = vmatpush1.bf16.msra.mxu0 %v115
    %323 = vmatprep.subr.bf16.mxu0 0
    %324 = vmatpush1.bf16.msra.mxu0 %v116
    %325 = vmatprep.subr.bf16.mxu0 0
    %326 = vmatpush1.bf16.msra.mxu0 %v117
    %327 = vmatprep.subr.bf16.mxu0 0
    %328 = vmatpush1.bf16.msra.mxu0 %v118
    %329 = vmatprep.subr.bf16.mxu0 0
    %330 = vmatpush1.bf16.msra.mxu0 %v119
    %331 = vmatprep.subr.bf16.mxu0 0
    %332 = vmatpush1.bf16.msra.mxu0 %v120
    %333 = vmatprep.subr.bf16.mxu0 0
    %334 = vmatpush1.bf16.msra.mxu0 %v121
    %335 = vmatprep.subr.bf16.mxu0 0
    %336 = vmatpush1.bf16.msra.mxu0 %v122
    %337 = vmatprep.subr.bf16.mxu0 0
    %338 = vmatpush1.bf16.msra.mxu0 0
    %339 = vmatprep.subr.bf16.mxu0 0
    %340 = vmatpush1.bf16.msra.mxu0 0
    %341 = vmatprep.subr.bf16.mxu0 0
    %342 = vmatpush1.bf16.msra.mxu0 0
    %343 = vmatprep.subr.bf16.mxu0 0
    %344 = vmatpush1.bf16.msra.mxu0 0
    %345 = vmatprep.subr.bf16.mxu0 0
    %346 = vmatpush1.bf16.msra.mxu0 0
    %347 = vmatprep.subr.bf16.mxu0 0
    %348 = vmatpush1.bf16.msra.mxu0 0
    %349 = vmatprep.subr.bf16.mxu0 0
    %350 = vmatpush1.bf16.msra.mxu0 0
    %351 = vmatprep.subr.bf16.mxu0 0
    %352 = vmatpush1.bf16.msra.mxu0 0
    %353 = vmatprep.mubr.bf16.mxu0 0
    %354 = vmatmul.mubr.bf16.gmra.mrb[0].mxu0 %v319
    %v355 = vpop.f32.mrb[0].mxu0
    %v356 = vadd.f32 %v320, %v355
    %v357 = vpop.f32.mrb[0].mxu0
    %v358 = vpop.f32.mrb[0].mxu0
    %v359 = vpop.f32.mrb[0].mxu0
    %360 = vdwg.mxu0
    %s361 = scalar_lea.vmem [#allocation2], 8
    %v362 = vld [vmem:[%s361] sm:$0x3]
    %v363 = vadd.f32 %v356, %v362
    %s364 = scalar_lea.vmem [#allocation7], 8
    %365 = vst [vmem:[%s364] sm:$0x3] %v363
    %v366 = vtanh.pop %v363
    %v367 = vpack.c.bf16 %v366, %v366
    %v368 = vmul.f32 %v80, %v363
    %369 = vmatprep.subr.bf16.mxu0 0
    %370 = vmatpush1.bf16.msra.mxu0 %v115
    %371 = vmatprep.subr.bf16.mxu0 0
    %372 = vmatpush1.bf16.msra.mxu0 %v116
    %373 = vmatprep.subr.bf16.mxu0 0
    %374 = vmatpush1.bf16.msra.mxu0 %v117
    %375 = vmatprep.subr.bf16.mxu0 0
    %376 = vmatpush1.bf16.msra.mxu0 %v118
    %377 = vmatprep.subr.bf16.mxu0 0
    %378 = vmatpush1.bf16.msra.mxu0 %v119
    %379 = vmatprep.subr.bf16.mxu0 0
    %380 = vmatpush1.bf16.msra.mxu0 %v120
    %381 = vmatprep.subr.bf16.mxu0 0
    %382 = vmatpush1.bf16.msra.mxu0 %v121
    %383 = vmatprep.subr.bf16.mxu0 0
    %384 = vmatpush1.bf16.msra.mxu0 %v122
    %385 = vmatprep.subr.bf16.mxu0 0
    %386 = vmatpush1.bf16.msra.mxu0 0
    %387 = vmatprep.subr.bf16.mxu0 0
    %388 = vmatpush1.bf16.msra.mxu0 0
    %389 = vmatprep.subr.bf16.mxu0 0
    %390 = vmatpush1.bf16.msra.mxu0 0
    %391 = vmatprep.subr.bf16.mxu0 0
    %392 = vmatpush1.bf16.msra.mxu0 0
    %393 = vmatprep.subr.bf16.mxu0 0
    %394 = vmatpush1.bf16.msra.mxu0 0
    %395 = vmatprep.subr.bf16.mxu0 0
    %396 = vmatpush1.bf16.msra.mxu0 0
    %397 = vmatprep.subr.bf16.mxu0 0
    %398 = vmatpush1.bf16.msra.mxu0 0
    %399 = vmatprep.subr.bf16.mxu0 0
    %400 = vmatpush1.bf16.msra.mxu0 0
    %401 = vmatprep.mubr.bf16.mxu0 0
    %402 = vmatmul.mubr.bf16.gmra.mrb[0].mxu0 %v367
    %v403 = vpop.f32.mrb[0].mxu0
    %v404 = vadd.f32 %v368, %v403
    %v405 = vpop.f32.mrb[0].mxu0
    %v406 = vpop.f32.mrb[0].mxu0
    %v407 = vpop.f32.mrb[0].mxu0
    %408 = vdwg.mxu0
    %s409 = scalar_lea.vmem [#allocation2], 10
    %v410 = vld [vmem:[%s409] sm:$0x3]
    %v411 = vadd.f32 %v404, %v410
    %s412 = scalar_lea.vmem [#allocation7], 10
    %413 = vst [vmem:[%s412] sm:$0x3] %v411
    %v414 = vtanh.pop %v411
    %v415 = vpack.c.bf16 %v414, %v414
    %v416 = vmul.f32 %v80, %v411
    %417 = vmatprep.subr.bf16.mxu0 0
    %418 = vmatpush1.bf16.msra.mxu0 %v115
    %419 = vmatprep.subr.bf16.mxu0 0
    %420 = vmatpush1.bf16.msra.mxu0 %v116
    %421 = vmatprep.subr.bf16.mxu0 0
    %422 = vmatpush1.bf16.msra.mxu0 %v117
    %423 = vmatprep.subr.bf16.mxu0 0
    %424 = vmatpush1.bf16.msra.mxu0 %v118
    %425 = vmatprep.subr.bf16.mxu0 0
    %426 = vmatpush1.bf16.msra.mxu0 %v119
    %427 = vmatprep.subr.bf16.mxu0 0
    %428 = vmatpush1.bf16.msra.mxu0 %v120
    %429 = vmatprep.subr.bf16.mxu0 0
    %430 = vmatpush1.bf16.msra.mxu0 %v121
    %431 = vmatprep.subr.bf16.mxu0 0
    %432 = vmatpush1.bf16.msra.mxu0 %v122
    %433 = vmatprep.subr.bf16.mxu0 0
    %434 = vmatpush1.bf16.msra.mxu0 0
    %435 = vmatprep.subr.bf16.mxu0 0
    %436 = vmatpush1.bf16.msra.mxu0 0
    %437 = vmatprep.subr.bf16.mxu0 0
    %438 = vmatpush1.bf16.msra.mxu0 0
    %439 = vmatprep.subr.bf16.mxu0 0
    %440 = vmatpush1.bf16.msra.mxu0 0
    %441 = vmatprep.subr.bf16.mxu0 0
    %442 = vmatpush1.bf16.msra.mxu0 0
    %443 = vmatprep.subr.bf16.mxu0 0
    %444 = vmatpush1.bf16.msra.mxu0 0
    %445 = vmatprep.subr.bf16.mxu0 0
    %446 = vmatpush1.bf16.msra.mxu0 0
    %447 = vmatprep.subr.bf16.mxu0 0
    %448 = vmatpush1.bf16.msra.mxu0 0
    %449 = vmatprep.mubr.bf16.mxu0 0
    %450 = vmatmul.mubr.bf16.gmra.mrb[0].mxu0 %v415
    %v451 = vpop.f32.mrb[0].mxu0
    %v452 = vadd.f32 %v416, %v451
    %v453 = vpop.f32.mrb[0].mxu0
    %v454 = vpop.f32.mrb[0].mxu0
    %v455 = vpop.f32.mrb[0].mxu0
    %456 = vdwg.mxu0
    %s457 = scalar_lea.vmem [#allocation2], 12
    %v458 = vld [vmem:[%s457] sm:$0x3]
    %v459 = vadd.f32 %v452, %v458
    %s460 = scalar_lea.vmem [#allocation7], 12
    %461 = vst [vmem:[%s460] sm:$0x3] %v459
    %v462 = vtanh.pop %v459
    %v463 = vpack.c.bf16 %v462, %v462
    %v464 = vmul.f32 %v80, %v459
    %465 = vmatprep.subr.bf16.mxu0 0
    %466 = vmatpush1.bf16.msra.mxu0 %v115
    %467 = vmatprep.subr.bf16.mxu0 0
    %468 = vmatpush1.bf16.msra.mxu0 %v116
    %469 = vmatprep.subr.bf16.mxu0 0
    %470 = vmatpush1.bf16.msra.mxu0 %v117
    %471 = vmatprep.subr.bf16.mxu0 0
    %472 = vmatpush1.bf16.msra.mxu0 %v118
    %473 = vmatprep.subr.bf16.mxu0 0
    %474 = vmatpush1.bf16.msra.mxu0 %v119
    %475 = vmatprep.subr.bf16.mxu0 0
    %476 = vmatpush1.bf16.msra.mxu0 %v120
    %477 = vmatprep.subr.bf16.mxu0 0
    %478 = vmatpush1.bf16.msra.mxu0 %v121
    %479 = vmatprep.subr.bf16.mxu0 0
    %480 = vmatpush1.bf16.msra.mxu0 %v122
    %481 = vmatprep.subr.bf16.mxu0 0
    %482 = vmatpush1.bf16.msra.mxu0 0
    %483 = vmatprep.subr.bf16.mxu0 0
    %484 = vmatpush1.bf16.msra.mxu0 0
    %485 = vmatprep.subr.bf16.mxu0 0
    %486 = vmatpush1.bf16.msra.mxu0 0
    %487 = vmatprep.subr.bf16.mxu0 0
    %488 = vmatpush1.bf16.msra.mxu0 0
    %489 = vmatprep.subr.bf16.mxu0 0
    %490 = vmatpush1.bf16.msra.mxu0 0
    %491 = vmatprep.subr.bf16.mxu0 0
    %492 = vmatpush1.bf16.msra.mxu0 0
    %493 = vmatprep.subr.bf16.mxu0 0
    %494 = vmatpush1.bf16.msra.mxu0 0
    %495 = vmatprep.subr.bf16.mxu0 0
    %496 = vmatpush1.bf16.msra.mxu0 0
    %497 = vmatprep.mubr.bf16.mxu0 0
    %498 = vmatmul.mubr.bf16.gmra.mrb[0].mxu0 %v463
    %v499 = vpop.f32.mrb[0].mxu0
    %v500 = vadd.f32 %v464, %v499
    %v501 = vpop.f32.mrb[0].mxu0
    %v502 = vpop.f32.mrb[0].mxu0
    %v503 = vpop.f32.mrb[0].mxu0
    %504 = vdwg.mxu0
    %s505 = scalar_lea.vmem [#allocation2], 14
    %v506 = vld [vmem:[%s505] sm:$0x3]
    %v507 = vadd.f32 %v500, %v506
    %s508 = scalar_lea.vmem [#allocation7], 14
    %509 = vst [vmem:[%s508] sm:$0x3] %v507
    %510 = vst [vmem:[#allocation8] sm:$0x3] %v507
    // Predicated region
    $region30: #{tpu_custom_call.1} parent=1 // pred_check
      _
    $region31: #{tpu_custom_call.1} parent=1 // pred_check_branch
      %512 = sbr.rel (0) target = $region33
    $region32: #{tpu_custom_call.1} parent=1 // pred_region
      %s514 = ssub.s32 256, 256
      %515 = vsyncadd [#allocation4], %s514
      %s516 = sshll.u32 [#allocation7], 4
      %s517 = int_to_ptr.vmem [resolvable:$true] %s516
      %522 = dma.vmem_to_hbm [thread:$0]  %s517, 256, %s4, [#allocation4], 32, 32, 2
    $region33: #{tpu_custom_call.1} parent=1 // pred_fallthru
      _
    // Predicated region
    $region34: #{tpu_custom_call.1} parent=1 // pred_check
      _
    $region35: #{tpu_custom_call.1} parent=1 // pred_check_branch
      %524 = sbr.rel (0) target = $region37
    $region36: #{tpu_custom_call.1} parent=1 // pred_region
      %s526 = ssub.s32 32, 32
      %527 = vsyncadd [#allocation9], %s526
      %s529 = sshll.u32 [#allocation8], 4
      %s530 = int_to_ptr.vmem [resolvable:$true] %s529
      %532 = dma.vmem_to_hbm [thread:$0]  %s530, 32, %s5, [#allocation9]
    $region37: #{tpu_custom_call.1} parent=1 // pred_fallthru
      _
    // Predicated region
    $region38: #{tpu_custom_call.1} parent=1 // pred_check
      _
    $region39: #{tpu_custom_call.1} parent=1 // pred_check_branch
      %534 = sbr.rel (0) target = $region41
    $region40: #{tpu_custom_call.1} parent=1 // pred_region
      %535 = dma.done [#allocation4], 256
    $region41: #{tpu_custom_call.1} parent=1 // pred_fallthru
      _
    // Predicated region
    $region42: #{tpu_custom_call.1} parent=1 // pred_check
      _
    $region43: #{tpu_custom_call.1} parent=1 // pred_check_branch
      %537 = sbr.rel (0) target = $region45
    $region44: #{tpu_custom_call.1} parent=1 // pred_region
      %538 = dma.done [#allocation9], 32
    $region45: #{tpu_custom_call.1} parent=1 // pred_fallthru
      _
    %539 = vsyncpa [#allocation3], 1
    %540 = vsyncpa [#allocation6], 1
    %541 = vsyncpa [#allocation4], 1
    %542 = vsyncpa [#allocation9], 1

</llo_original>
